<compile_context>
chip_gen: v7x
topology: tpu7x:2x2x1
jax: 0.10.0
libtpu: 0.0.40
codegen_flags: <defaults>
</compile_context>

<pallas_src>
import functools
import math

import jax
import jax.numpy as jnp
from jax import lax
from jax.experimental import pallas as pl
from jax.experimental.pallas import tpu as pltpu


def _round_up(x: int, m: int) -> int:
    return ((x + m - 1) // m) * m


def _adaptive_loss_kernel(scal_ref, pred_ref, tgt_ref, out_ref,
                          hub_acc, mape_acc, hit_acc,
                          *, tb, lanes, spc, n_full_rows, n_rem, has_ragged):
    c = pl.program_id(0)          # parallel (core) axis
    i = pl.program_id(1)          # reduction steps for this core

    @pl.when(i == 0)
    def _init():
        hub_acc[...] = jnp.zeros_like(hub_acc)
        mape_acc[...] = jnp.zeros_like(mape_acc)
        hit_acc[...] = jnp.zeros_like(hit_acc)

    delta = scal_ref[0]           # SMEM scalars: runtime values, no recompile
    thresh = scal_ref[1]          # == 0.01 * loss_tube

    # Stream native dtype from HBM, upcast on-chip.
    p_raw = pred_ref[...].astype(jnp.float32)
    t_raw = tgt_ref[...].astype(jnp.float32)

    def _accumulate(p, t, valid):
        d = p - t
        absd = jnp.abs(d)
        # torch.nn.HuberLoss elementwise term (mean reduction applied at end)
        huber = jnp.where(absd <= delta, 0.5 * d * d,
                          delta * (absd - 0.5 * delta))
        # |target - pred| / clamp(target, min=1e-7); reciprocal runs on the EUP
        mape = absd * pl.reciprocal(jnp.maximum(t, 1e-7), approx=False)
        hit = mape < thresh
        if valid is not None:
            hit = jnp.logical_and(hit, valid)
        hit = hit.astype(jnp.float32)
        # Reduce each (tb, lanes) tile only down to (8, lanes): pure vreg-to-
        # vreg VALU adds, no per-step cross-sublane (XLU) work.
        hub_acc[...] += jnp.sum(huber.reshape(tb // 8, 8, lanes), axis=0)
        mape_acc[...] += jnp.sum(mape.reshape(tb // 8, 8, lanes), axis=0)
        hit_acc[...] += jnp.sum(hit.reshape(tb // 8, 8, lanes), axis=0)

    if has_ragged:
        block_row0 = (c * spc + i) * tb
        is_clean = block_row0 + tb <= n_full_rows

        @pl.when(is_clean)
        def _fast():                      # hot path: no masking at all
            _accumulate(p_raw, t_raw, None)

        @pl.when(jnp.logical_not(is_clean))
        def _ragged():                    # at most one block per core
            row = block_row0 + lax.broadcasted_iota(jnp.int32, (tb, lanes), 0)
            col = lax.broadcasted_iota(jnp.int32, (tb, lanes), 1)
            valid = jnp.logical_or(
                row < n_full_rows,
                jnp.logical_and(row == n_full_rows, col < n_rem))
            # Safe values so padded / out-of-bounds garbage contributes exactly
            # 0 to huber and mape (and is excluded from the tube hit count).
            p = jnp.where(valid, p_raw, 1.0)
            t = jnp.where(valid, t_raw, 1.0)
            _accumulate(p, t, valid)
    else:
        _accumulate(p_raw, t_raw, None)

    @pl.when(i == spc - 1)
    def _finalize():
        hub = jnp.sum(hub_acc[...])
        mp = jnp.sum(mape_acc[...])
        ht = jnp.sum(hit_acc[...])
        lane = lax.broadcasted_iota(jnp.int32, (1, 8, 128), 2)
        # one full, unmasked (1, 8, 128) store: lane0=huber, lane1=mape, lane2=hits
        out_ref[...] = jnp.where(
            lane == 0, hub,
            jnp.where(lane == 1, mp,
                      jnp.where(lane == 2, ht, 0.0)))


def adaptive_loss_forward(pred, target, *, delta=0.01, loss_tube=1.0,
                          row_tile=2048, lanes=512, num_cores=2):
    """Pallas forward of AdaptiveLoss -> {'main_loss', 'mape', 'tube'} scalars."""
    if loss_tube is None:
        # TODO(synk): in the PyTorch module self.loss_tube is None at __init__
        # and is set externally before forward(); same requirement here.
        raise ValueError("loss_tube must be set before calling the loss")
    assert pred.shape == target.shape
    assert lanes % 128 == 0 and lanes >= 128
    n = int(math.prod(pred.shape))
    assert n > 0

    p = jnp.ravel(pred)          # free reshape; dtype kept native
    t = jnp.ravel(target)

    # Lane-dense repack.  Zero-copy (pure reshape) whenever a multiple of 128
    # divides n; otherwise pad by < 128 elements (the only copying path).
    chosen = None
    cand = int(lanes)
    while cand >= 128:
        if n % cand == 0:
            chosen = cand
            break
        cand //= 2
    if chosen is None:
        chosen = 128
        pad = _round_up(n, 128) - n
        p = jnp.pad(p, (0, pad))
        t = jnp.pad(t, (0, pad))
    lanes = chosen
    rows = p.shape[0] // lanes
    p = p.reshape(rows, lanes)
    t = t.reshape(rows, lanes)

    # Row tile: multiple of the sublane packing factor of the narrowest dtype
    # (8 for f32, 16 for bf16, 32 for 8-bit types).
    min_bytes = min(jnp.dtype(pred.dtype).itemsize,
                    jnp.dtype(target.dtype).itemsize)
    mult = 8 * max(1, 4 // max(1, int(min_bytes)))
    tb = min(int(row_tile), _round_up(rows, mult))
    tb = max(mult, (tb // mult) * mult)

    total_blocks = -(-rows // tb)
    nc = max(1, min(int(num_cores), total_blocks))
    spc = -(-total_blocks // nc)                 # reduction steps per core
    n_full_rows = n // lanes
    n_rem = n % lanes
    has_ragged = (n_rem != 0) or (nc * spc * tb != n_full_rows)

    last_block = total_blocks - 1
    if nc * spc == total_blocks:
        def in_map(c, i):
            return (c * spc + i, 0)
    else:
        def in_map(c, i):                        # clamp redundant tail blocks
            return (jnp.minimum(c * spc + i, last_block), 0)

    kernel = functools.partial(
        _adaptive_loss_kernel, tb=tb, lanes=lanes, spc=spc,
        n_full_rows=n_full_rows, n_rem=n_rem, has_ragged=has_ragged)

    # SMEM scalars: [delta, 0.01 * loss_tube] — runtime, no Mosaic recompile.
    scalars = jnp.array([float(delta), 0.01 * float(loss_tube)],
                        dtype=jnp.float32)

    block_bytes = tb * lanes * (jnp.dtype(pred.dtype).itemsize
                                + jnp.dtype(target.dtype).itemsize)
    # 2x for double buffering + headroom; clamped to fit every generation.
    vmem_limit = int(min(max(2 * block_bytes + (8 << 20), 32 << 20), 48 << 20))

    out = pl.pallas_call(
        kernel,
        out_shape=jax.ShapeDtypeStruct((nc, 8, 128), jnp.float32),
        grid_spec=pltpu.PrefetchScalarGridSpec(
            num_scalar_prefetch=0,
            grid=(nc, spc),
            in_specs=[
                pl.BlockSpec(memory_space=pltpu.MemorySpace.SMEM),
                pl.BlockSpec((tb, lanes), in_map),
                pl.BlockSpec((tb, lanes), in_map),
            ],
            out_specs=pl.BlockSpec((1, 8, 128), lambda c, i: (c, 0, 0)),
            scratch_shapes=[
                pltpu.VMEM((8, lanes), jnp.float32),
                pltpu.VMEM((8, lanes), jnp.float32),
                pltpu.VMEM((8, lanes), jnp.float32),
            ],
        ),
        compiler_params=pltpu.CompilerParams(
            dimension_semantics=("parallel", "arbitrary"),
            vmem_limit_bytes=vmem_limit),
    )(scalars, p, t)

    inv_n = jnp.float32(1.0 / n)
    return {
        "main_loss": jnp.sum(out[:, 0, 0]) * inv_n,
        "mape": jnp.sum(out[:, 0, 1]) * inv_n,
        "tube": jnp.sum(out[:, 0, 2]) * inv_n,
    }


def adaptive_loss_reference(pred, target, *, delta=0.01, loss_tube=1.0):
    p = pred.astype(jnp.float32)
    t = target.astype(jnp.float32)
    d = p - t
    absd = jnp.abs(d)
    huber = jnp.where(absd <= delta, 0.5 * d * d, delta * (absd - 0.5 * delta))
    mape = absd / jnp.maximum(t, 1e-7)
    tube = jnp.sum((mape < 0.01 * loss_tube).astype(jnp.float32)) / mape.size
    return {"main_loss": jnp.mean(huber), "mape": jnp.mean(mape), "tube": tube}


if __name__ == "__main__":
    key = jax.random.PRNGKey(0)

    def make_case(k, shape, dtype):
        k1, k2 = jax.random.split(k)
        tgt = jnp.abs(jax.random.normal(k1, shape, jnp.float32)) + 0.1
        prd = tgt * (1.0 + 0.02 * jax.random.normal(k2, shape, jnp.float32))
        return prd.astype(dtype), tgt.astype(dtype)

    # Small shapes exercising the three code paths:
    #  1) zero-copy lane-dense path + ragged last block + 2-core grid split
    #  2) non-128-divisible fallback (tiny pad) + clamped redundant tail block
    #  3) bf16 input (in-kernel upcast), single clean block, default tiles
    cases = [
        ((4, 50, 32), jnp.float32, 16),
        ((4, 50, 30), jnp.float32, 16),
        ((2, 64, 256), jnp.bfloat16, 2048),
    ]

    delta, loss_tube = 0.01, 1.0
    keys = jax.random.split(key, len(cases))
    for (shape, dtype, row_tile), ck in zip(cases, keys):
        pred, target = make_case(ck, shape, dtype)
        out = adaptive_loss_forward(pred, target, delta=delta,
                                    loss_tube=loss_tube, row_tile=row_tile)
        out = {name: jax.block_until_ready(v) for name, v in out.items()}
        ref = adaptive_loss_reference(pred, target, delta=delta,
                                      loss_tube=loss_tube)
        assert jnp.allclose(out["main_loss"], ref["main_loss"],
                            rtol=1e-4, atol=1e-7), \
            (shape, out["main_loss"], ref["main_loss"])
        assert jnp.allclose(out["mape"], ref["mape"], rtol=1e-4, atol=1e-6), \
            (shape, out["mape"], ref["mape"])
        assert jnp.allclose(out["tube"], ref["tube"], atol=2e-3), \
            (shape, out["tube"], ref["tube"])

    print("KERNEL_OK")
</pallas_src>

<mosaic_0001>
module attributes {stable_mosaic.version = 11 : i64} {
  func.func @_adaptive_loss_kernel(%arg0: i32, %arg1: i32, %arg2: memref<2xf32, #tpu.memory_space<smem>>, %arg3: memref<16x256xf32, #tpu.memory_space<vmem>>, %arg4: memref<16x256xf32, #tpu.memory_space<vmem>>, %arg5: memref<1x8x128xf32, #tpu.memory_space<vmem>>, %arg6: memref<8x256xf32, #tpu.memory_space<vmem>>, %arg7: memref<8x256xf32, #tpu.memory_space<vmem>>, %arg8: memref<8x256xf32, #tpu.memory_space<vmem>>) attributes {dimension_semantics = [#tpu.dimension_semantics<parallel>, #tpu.dimension_semantics<arbitrary>], iteration_bounds = array<i64: 2, 1>, scalar_prefetch = 0 : i64, scratch_operands = 3 : i64, tpu.core_type = #tpu.core_type<tc>, window_params = [{transform_indices = @transform_0, window_bounds = array<i64: 2>}, {transform_indices = @transform_1, window_bounds = array<i64: 16, 256>}, {transform_indices = @transform_2, window_bounds = array<i64: 16, 256>}, {transform_indices = @transform_3, window_bounds = array<i64: 1, 8, 128>}]} {
    %c0_i32 = arith.constant 0 : i32
    %0 = arith.cmpi eq, %arg1, %c0_i32 : i32
    %1 = arith.extui %0 : i1 to i32
    %c0_i32_0 = arith.constant 0 : i32
    %2 = arith.cmpi ne, %1, %c0_i32_0 : i32
    scf.if %2 {
      %cst = arith.constant 0.000000e+00 : f32
      %20 = vector.broadcast %cst : f32 to vector<8x256xf32>
      %c0_10 = arith.constant 0 : index
      %c0_11 = arith.constant 0 : index
      %21 = vector.load %arg6[%c0_10, %c0_11] : memref<8x256xf32, #tpu.memory_space<vmem>>, vector<8x256xf32>
      tpu.vector_store %arg6[%c0_10, %c0_11], %20 {strides = array<i32>} : memref<8x256xf32, #tpu.memory_space<vmem>>, vector<8x256xf32>,
      %cst_12 = arith.constant 0.000000e+00 : f32
      %22 = vector.broadcast %cst_12 : f32 to vector<8x256xf32>
      %c0_13 = arith.constant 0 : index
      %c0_14 = arith.constant 0 : index
      %23 = vector.load %arg7[%c0_13, %c0_14] : memref<8x256xf32, #tpu.memory_space<vmem>>, vector<8x256xf32>
      tpu.vector_store %arg7[%c0_13, %c0_14], %22 {strides = array<i32>} : memref<8x256xf32, #tpu.memory_space<vmem>>, vector<8x256xf32>,
      %cst_15 = arith.constant 0.000000e+00 : f32
      %24 = vector.broadcast %cst_15 : f32 to vector<8x256xf32>
      %c0_16 = arith.constant 0 : index
      %c0_17 = arith.constant 0 : index
      %25 = vector.load %arg8[%c0_16, %c0_17] : memref<8x256xf32, #tpu.memory_space<vmem>>, vector<8x256xf32>
      tpu.vector_store %arg8[%c0_16, %c0_17], %24 {strides = array<i32>} : memref<8x256xf32, #tpu.memory_space<vmem>>, vector<8x256xf32>,
    } else {
    }
    %c0 = arith.constant 0 : index
    %3 = memref.load %arg2[%c0] : memref<2xf32, #tpu.memory_space<smem>>
    %c1 = arith.constant 1 : index
    %4 = memref.load %arg2[%c1] : memref<2xf32, #tpu.memory_space<smem>>
    %c0_1 = arith.constant 0 : index
    %c0_2 = arith.constant 0 : index
    %5 = vector.load %arg3[%c0_1, %c0_2] : memref<16x256xf32, #tpu.memory_space<vmem>>, vector<16x256xf32>
    %c0_3 = arith.constant 0 : index
    %c0_4 = arith.constant 0 : index
    %6 = vector.load %arg4[%c0_3, %c0_4] : memref<16x256xf32, #tpu.memory_space<vmem>>, vector<16x256xf32>
    %c1_i32 = arith.constant 1 : i32
    %7 = arith.muli %arg0, %c1_i32 : i32
    %8 = arith.addi %7, %arg1 : i32
    %c16_i32 = arith.constant 16 : i32
    %9 = arith.muli %8, %c16_i32 : i32
    %c16_i32_5 = arith.constant 16 : i32
    %10 = arith.addi %9, %c16_i32_5 : i32
    %c25_i32 = arith.constant 25 : i32
    %11 = arith.cmpi sle, %10, %c25_i32 : i32
    %12 = arith.extui %11 : i1 to i32
    %c0_i32_6 = arith.constant 0 : i32
    %13 = arith.cmpi ne, %12, %c0_i32_6 : i32
    scf.if %13 {
      %20 = arith.subf %5, %6 : vector<16x256xf32>
      %21 = math.absf %20 : vector<16x256xf32>
      %22 = vector.broadcast %3 : f32 to vector<16x256xf32>
      %23 = arith.cmpf ole, %21, %22 : vector<16x256xf32>
      %cst = arith.constant 5.000000e-01 : f32
      %24 = vector.broadcast %cst : f32 to vector<16x256xf32>
      %25 = arith.mulf %24, %20 : vector<16x256xf32>
      %26 = arith.mulf %25, %20 : vector<16x256xf32>
      %cst_10 = arith.constant 5.000000e-01 : f32
      %27 = arith.mulf %cst_10, %3 : f32
      %28 = vector.broadcast %27 : f32 to vector<16x256xf32>
      %29 = arith.subf %21, %28 : vector<16x256xf32>
      %30 = vector.broadcast %3 : f32 to vector<16x256xf32>
      %31 = arith.mulf %30, %29 : vector<16x256xf32>
      %32 = arith.select %23, %26, %31 : vector<16x256xi1>, vector<16x256xf32>
      %cst_11 = arith.constant 1.000000e-07 : f32
      %33 = vector.broadcast %cst_11 : f32 to vector<16x256xf32>
      %34 = arith.maximumf %6, %33 : vector<16x256xf32>
      %35 = tpu.reciprocal %34 : vector<16x256xf32> -> vector<16x256xf32>
      %36 = arith.mulf %21, %35 : vector<16x256xf32>
      %37 = vector.broadcast %4 : f32 to vector<16x256xf32>
      %38 = arith.cmpf olt, %36, %37 : vector<16x256xf32>
      %39 = arith.extui %38 : vector<16x256xi1> to vector<16x256xi32>
      %40 = arith.sitofp %39 : vector<16x256xi32> to vector<16x256xf32>
      %c0_12 = arith.constant 0 : index
      %c0_13 = arith.constant 0 : index
      %41 = vector.load %arg6[%c0_12, %c0_13] : memref<8x256xf32, #tpu.memory_space<vmem>>, vector<8x256xf32>
      %42 = vector.shape_cast %32 : vector<16x256xf32> to vector<2x8x256xf32>
      %cst_14 = arith.constant dense<0.000000e+00> : vector<8x256xf32>
      %43 = vector.multi_reduction <add>, %42, %cst_14 [0] : vector<2x8x256xf32> to vector<8x256xf32>
      %44 = arith.addf %41, %43 : vector<8x256xf32>
      %c0_15 = arith.constant 0 : index
      %c0_16 = arith.constant 0 : index
      %45 = vector.load %arg6[%c0_15, %c0_16] : memref<8x256xf32, #tpu.memory_space<vmem>>, vector<8x256xf32>
      tpu.vector_store %arg6[%c0_15, %c0_16], %44 {strides = array<i32>} : memref<8x256xf32, #tpu.memory_space<vmem>>, vector<8x256xf32>,
      %c0_17 = arith.constant 0 : index
      %c0_18 = arith.constant 0 : index
      %46 = vector.load %arg7[%c0_17, %c0_18] : memref<8x256xf32, #tpu.memory_space<vmem>>, vector<8x256xf32>
      %47 = vector.shape_cast %36 : vector<16x256xf32> to vector<2x8x256xf32>
      %cst_19 = arith.constant dense<0.000000e+00> : vector<8x256xf32>
      %48 = vector.multi_reduction <add>, %47, %cst_19 [0] : vector<2x8x256xf32> to vector<8x256xf32>
      %49 = arith.addf %46, %48 : vector<8x256xf32>
      %c0_20 = arith.constant 0 : index
      %c0_21 = arith.constant 0 : index
      %50 = vector.load %arg7[%c0_20, %c0_21] : memref<8x256xf32, #tpu.memory_space<vmem>>, vector<8x256xf32>
      tpu.vector_store %arg7[%c0_20, %c0_21], %49 {strides = array<i32>} : memref<8x256xf32, #tpu.memory_space<vmem>>, vector<8x256xf32>,
      %c0_22 = arith.constant 0 : index
      %c0_23 = arith.constant 0 : index
      %51 = vector.load %arg8[%c0_22, %c0_23] : memref<8x256xf32, #tpu.memory_space<vmem>>, vector<8x256xf32>
      %52 = vector.shape_cast %40 : vector<16x256xf32> to vector<2x8x256xf32>
      %cst_24 = arith.constant dense<0.000000e+00> : vector<8x256xf32>
      %53 = vector.multi_reduction <add>, %52, %cst_24 [0] : vector<2x8x256xf32> to vector<8x256xf32>
      %54 = arith.addf %51, %53 : vector<8x256xf32>
      %c0_25 = arith.constant 0 : index
      %c0_26 = arith.constant 0 : index
      %55 = vector.load %arg8[%c0_25, %c0_26] : memref<8x256xf32, #tpu.memory_space<vmem>>, vector<8x256xf32>
      tpu.vector_store %arg8[%c0_25, %c0_26], %54 {strides = array<i32>} : memref<8x256xf32, #tpu.memory_space<vmem>>, vector<8x256xf32>,
    } else {
    }
    %true = arith.constant true
    %14 = arith.xori %11, %true : i1
    %15 = arith.extui %14 : i1 to i32
    %c0_i32_7 = arith.constant 0 : i32
    %16 = arith.cmpi ne, %15, %c0_i32_7 : i32
    scf.if %16 {
      %20 = tpu.iota {dimensions = array<i32: 0>} : vector<16x256xi32>
      %21 = vector.broadcast %9 : i32 to vector<16x256xi32>
      %22 = arith.addi %21, %20 : vector<16x256xi32>
      %23 = tpu.iota {dimensions = array<i32: 1>} : vector<16x256xi32>
      %c25_i32_10 = arith.constant 25 : i32
      %24 = vector.broadcast %c25_i32_10 : i32 to vector<16x256xi32>
      %25 = arith.cmpi slt, %22, %24 : vector<16x256xi32>
      %c25_i32_11 = arith.constant 25 : i32
      %26 = vector.broadcast %c25_i32_11 : i32 to vector<16x256xi32>
      %27 = arith.cmpi eq, %22, %26 : vector<16x256xi32>
      %c0_i32_12 = arith.constant 0 : i32
      %28 = vector.broadcast %c0_i32_12 : i32 to vector<16x256xi32>
      %29 = arith.cmpi slt, %23, %28 : vector<16x256xi32>
      %30 = arith.andi %27, %29 : vector<16x256xi1>
      %31 = arith.ori %25, %30 : vector<16x256xi1>
      %cst = arith.constant 1.000000e+00 : f32
      %32 = vector.broadcast %cst : f32 to vector<16x256xf32>
      %33 = arith.select %31, %5, %32 : vector<16x256xi1>, vector<16x256xf32>
      %cst_13 = arith.constant 1.000000e+00 : f32
      %34 = vector.broadcast %cst_13 : f32 to vector<16x256xf32>
      %35 = arith.select %31, %6, %34 : vector<16x256xi1>, vector<16x256xf32>
      %36 = arith.subf %33, %35 : vector<16x256xf32>
      %37 = math.absf %36 : vector<16x256xf32>
      %38 = vector.broadcast %3 : f32 to vector<16x256xf32>
      %39 = arith.cmpf ole, %37, %38 : vector<16x256xf32>
      %cst_14 = arith.constant 5.000000e-01 : f32
      %40 = vector.broadcast %cst_14 : f32 to vector<16x256xf32>
      %41 = arith.mulf %40, %36 : vector<16x256xf32>
      %42 = arith.mulf %41, %36 : vector<16x256xf32>
      %cst_15 = arith.constant 5.000000e-01 : f32
      %43 = arith.mulf %cst_15, %3 : f32
      %44 = vector.broadcast %43 : f32 to vector<16x256xf32>
      %45 = arith.subf %37, %44 : vector<16x256xf32>
      %46 = vector.broadcast %3 : f32 to vector<16x256xf32>
      %47 = arith.mulf %46, %45 : vector<16x256xf32>
      %48 = arith.select %39, %42, %47 : vector<16x256xi1>, vector<16x256xf32>
      %cst_16 = arith.constant 1.000000e-07 : f32
      %49 = vector.broadcast %cst_16 : f32 to vector<16x256xf32>
      %50 = arith.maximumf %35, %49 : vector<16x256xf32>
      %51 = tpu.reciprocal %50 : vector<16x256xf32> -> vector<16x256xf32>
      %52 = arith.mulf %37, %51 : vector<16x256xf32>
      %53 = vector.broadcast %4 : f32 to vector<16x256xf32>
      %54 = arith.cmpf olt, %52, %53 : vector<16x256xf32>
      %55 = arith.andi %54, %31 : vector<16x256xi1>
      %56 = arith.extui %55 : vector<16x256xi1> to vector<16x256xi32>
      %57 = arith.sitofp %56 : vector<16x256xi32> to vector<16x256xf32>
      %c0_17 = arith.constant 0 : index
      %c0_18 = arith.constant 0 : index
      %58 = vector.load %arg6[%c0_17, %c0_18] : memref<8x256xf32, #tpu.memory_space<vmem>>, vector<8x256xf32>
      %59 = vector.shape_cast %48 : vector<16x256xf32> to vector<2x8x256xf32>
      %cst_19 = arith.constant dense<0.000000e+00> : vector<8x256xf32>
      %60 = vector.multi_reduction <add>, %59, %cst_19 [0] : vector<2x8x256xf32> to vector<8x256xf32>
      %61 = arith.addf %58, %60 : vector<8x256xf32>
      %c0_20 = arith.constant 0 : index
      %c0_21 = arith.constant 0 : index
      %62 = vector.load %arg6[%c0_20, %c0_21] : memref<8x256xf32, #tpu.memory_space<vmem>>, vector<8x256xf32>
      tpu.vector_store %arg6[%c0_20, %c0_21], %61 {strides = array<i32>} : memref<8x256xf32, #tpu.memory_space<vmem>>, vector<8x256xf32>,
      %c0_22 = arith.constant 0 : index
      %c0_23 = arith.constant 0 : index
      %63 = vector.load %arg7[%c0_22, %c0_23] : memref<8x256xf32, #tpu.memory_space<vmem>>, vector<8x256xf32>
      %64 = vector.shape_cast %52 : vector<16x256xf32> to vector<2x8x256xf32>
      %cst_24 = arith.constant dense<0.000000e+00> : vector<8x256xf32>
      %65 = vector.multi_reduction <add>, %64, %cst_24 [0] : vector<2x8x256xf32> to vector<8x256xf32>
      %66 = arith.addf %63, %65 : vector<8x256xf32>
      %c0_25 = arith.constant 0 : index
      %c0_26 = arith.constant 0 : index
      %67 = vector.load %arg7[%c0_25, %c0_26] : memref<8x256xf32, #tpu.memory_space<vmem>>, vector<8x256xf32>
      tpu.vector_store %arg7[%c0_25, %c0_26], %66 {strides = array<i32>} : memref<8x256xf32, #tpu.memory_space<vmem>>, vector<8x256xf32>,
      %c0_27 = arith.constant 0 : index
      %c0_28 = arith.constant 0 : index
      %68 = vector.load %arg8[%c0_27, %c0_28] : memref<8x256xf32, #tpu.memory_space<vmem>>, vector<8x256xf32>
      %69 = vector.shape_cast %57 : vector<16x256xf32> to vector<2x8x256xf32>
      %cst_29 = arith.constant dense<0.000000e+00> : vector<8x256xf32>
      %70 = vector.multi_reduction <add>, %69, %cst_29 [0] : vector<2x8x256xf32> to vector<8x256xf32>
      %71 = arith.addf %68, %70 : vector<8x256xf32>
      %c0_30 = arith.constant 0 : index
      %c0_31 = arith.constant 0 : index
      %72 = vector.load %arg8[%c0_30, %c0_31] : memref<8x256xf32, #tpu.memory_space<vmem>>, vector<8x256xf32>
      tpu.vector_store %arg8[%c0_30, %c0_31], %71 {strides = array<i32>} : memref<8x256xf32, #tpu.memory_space<vmem>>, vector<8x256xf32>,
    } else {
    }
    %c0_i32_8 = arith.constant 0 : i32
    %17 = arith.cmpi eq, %arg1, %c0_i32_8 : i32
    %18 = arith.extui %17 : i1 to i32
    %c0_i32_9 = arith.constant 0 : i32
    %19 = arith.cmpi ne, %18, %c0_i32_9 : i32
    scf.if %19 {
      %c0_10 = arith.constant 0 : index
      %c0_11 = arith.constant 0 : index
      %20 = vector.load %arg6[%c0_10, %c0_11] : memref<8x256xf32, #tpu.memory_space<vmem>>, vector<8x256xf32>
      %21 = vector.shape_cast %20 : vector<8x256xf32> to vector<1x8x256xf32>
      %cst = arith.constant dense<0.000000e+00> : vector<1xf32>
      %22 = vector.multi_reduction <add>, %21, %cst [1, 2] : vector<1x8x256xf32> to vector<1xf32>
      %23 = vector.shape_cast %22 : vector<1xf32> to vector<1x1x1xf32>
      %24 = vector.extract %23[0, 0, 0] : f32 from vector<1x1x1xf32>
      %c0_12 = arith.constant 0 : index
      %c0_13 = arith.constant 0 : index
      %25 = vector.load %arg7[%c0_12, %c0_13] : memref<8x256xf32, #tpu.memory_space<vmem>>, vector<8x256xf32>
      %26 = vector.shape_cast %25 : vector<8x256xf32> to vector<1x8x256xf32>
      %cst_14 = arith.constant dense<0.000000e+00> : vector<1xf32>
      %27 = vector.multi_reduction <add>, %26, %cst_14 [1, 2] : vector<1x8x256xf32> to vector<1xf32>
      %28 = vector.shape_cast %27 : vector<1xf32> to vector<1x1x1xf32>
      %29 = vector.extract %28[0, 0, 0] : f32 from vector<1x1x1xf32>
      %c0_15 = arith.constant 0 : index
      %c0_16 = arith.constant 0 : index
      %30 = vector.load %arg8[%c0_15, %c0_16] : memref<8x256xf32, #tpu.memory_space<vmem>>, vector<8x256xf32>
      %31 = vector.shape_cast %30 : vector<8x256xf32> to vector<1x8x256xf32>
      %cst_17 = arith.constant dense<0.000000e+00> : vector<1xf32>
      %32 = vector.multi_reduction <add>, %31, %cst_17 [1, 2] : vector<1x8x256xf32> to vector<1xf32>
      %33 = vector.shape_cast %32 : vector<1xf32> to vector<1x1x1xf32>
      %34 = vector.extract %33[0, 0, 0] : f32 from vector<1x1x1xf32>
      %35 = tpu.iota {dimensions = array<i32: 2>} : vector<1x8x128xi32>
      %c0_i32_18 = arith.constant 0 : i32
      %36 = vector.broadcast %c0_i32_18 : i32 to vector<1x8x128xi32>
      %37 = arith.cmpi eq, %35, %36 : vector<1x8x128xi32>
      %c1_i32_19 = arith.constant 1 : i32
      %38 = vector.broadcast %c1_i32_19 : i32 to vector<1x8x128xi32>
      %39 = arith.cmpi eq, %35, %38 : vector<1x8x128xi32>
      %c2_i32 = arith.constant 2 : i32
      %40 = vector.broadcast %c2_i32 : i32 to vector<1x8x128xi32>
      %41 = arith.cmpi eq, %35, %40 : vector<1x8x128xi32>
      %cst_20 = arith.constant 0.000000e+00 : f32
      %42 = vector.broadcast %34 : f32 to vector<1x8x128xf32>
      %43 = vector.broadcast %cst_20 : f32 to vector<1x8x128xf32>
      %44 = arith.select %41, %42, %43 : vector<1x8x128xi1>, vector<1x8x128xf32>
      %45 = vector.broadcast %29 : f32 to vector<1x8x128xf32>
      %46 = arith.select %39, %45, %44 : vector<1x8x128xi1>, vector<1x8x128xf32>
      %47 = vector.broadcast %24 : f32 to vector<1x8x128xf32>
      %48 = arith.select %37, %47, %46 : vector<1x8x128xi1>, vector<1x8x128xf32>
      %c0_21 = arith.constant 0 : index
      %c0_22 = arith.constant 0 : index
      %c0_23 = arith.constant 0 : index
      %49 = vector.load %arg5[%c0_21, %c0_22, %c0_23] : memref<1x8x128xf32, #tpu.memory_space<vmem>>, vector<1x8x128xf32>
      tpu.vector_store %arg5[%c0_21, %c0_22, %c0_23], %48 {strides = array<i32>} : memref<1x8x128xf32, #tpu.memory_space<vmem>>, vector<1x8x128xf32>,
    } else {
    }
    return
  }
  func.func @transform_0(%arg0: i32, %arg1: i32) -> i32 {
    %c0_i32 = arith.constant 0 : i32
    %c0_i32_0 = arith.constant 0 : i32
    return %c0_i32 : i32
  }
  func.func @transform_1(%arg0: i32, %arg1: i32) -> (i32, i32) {
    %c1_i32 = arith.constant 1 : i32
    %0 = arith.muli %arg0, %c1_i32 : i32
    %1 = arith.addi %0, %arg1 : i32
    %c0_i32 = arith.constant 0 : i32
    %c0_i32_0 = arith.constant 0 : i32
    return %1, %c0_i32 : i32, i32
  }
  func.func @transform_2(%arg0: i32, %arg1: i32) -> (i32, i32) {
    %c1_i32 = arith.constant 1 : i32
    %0 = arith.muli %arg0, %c1_i32 : i32
    %1 = arith.addi %0, %arg1 : i32
    %c0_i32 = arith.constant 0 : i32
    %c0_i32_0 = arith.constant 0 : i32
    return %1, %c0_i32 : i32, i32
  }
  func.func @transform_3(%arg0: i32, %arg1: i32) -> (i32, i32, i32) {
    %c0_i32 = arith.constant 0 : i32
    %c0_i32_0 = arith.constant 0 : i32
    %c0_i32_1 = arith.constant 0 : i32
    return %arg0, %c0_i32, %c0_i32_0 : i32, i32, i32
  }
}

</mosaic_0001>

<llo_original>
// kernel: tpu_custom_call.1
$region0: #{tpu_custom_call.1}
  #allocation0 [shape = 'u32[]', space=smem, size = 0x4, offset = 0x4, fixed_abs, tag = 'smem constant byte address 0x4 - core index']
  #allocation1 [shape = 'u32[144,128]{1,0:T(1,128)}', space=vmem, size = 0x12000, scoped, tag = 'internal scratch']
  #allocation2 [shape = 'f32[8,256]{1,0:T(8,128)}', space=vmem, size = 0x2000, scoped, tag = 'scratch operand']
  #allocation3 [shape = 'f32[8,256]{1,0:T(8,128)}', space=vmem, size = 0x2000, scoped, tag = 'scratch operand']
  #allocation4 [shape = 'f32[8,256]{1,0:T(8,128)}', space=vmem, size = 0x2000, scoped, tag = 'scratch operand']
  %s0 = inlined_call_operand.hbm [shape: f32[2], index: 0, kind: input, shape index: {}]
  %s1 = inlined_call_operand.hbm [shape: f32[25,256], index: 1, kind: input, shape index: {}]
  %s2 = inlined_call_operand.hbm [shape: f32[25,256], index: 2, kind: input, shape index: {}]
  %s3 = inlined_call_operand.hbm [shape: f32[2,8,128], index: 3, kind: output, shape index: {}]
  %s4 = sld [smem:[#allocation0]]
  $region73: #{tpu_custom_call.1} parent=0
    _
  %s6 = ssub.s32 1, %s4
  %s7 = scalar_select 0, %s6, %s4
  $region1: #{tpu_custom_call.1} parent=0
    #allocation5 [shape = 'u8[512]{0}', space=smem, size = 0x200, scoped, tag = 'input window, operand 0, single buffered']
    #allocation6 [shape = 's32[2]{0}', space=sflag, size = 0x8, scoped, tag = 'scoped memory for tpu_custom_call.1']
    #allocation7 [shape = 's32[2]{0}', space=sflag, size = 0x8, scoped, tag = 'scoped memory for tpu_custom_call.1']
    #allocation8 [shape = 's32[2]{0}', space=sflag, size = 0x8, scoped, tag = 'scoped memory for tpu_custom_call.1']
    #allocation9 [shape = 'u8[32768]{0}', space=vmem, size = 0x8000, scoped, tag = 'input window, operand 1']
    #allocation10 [shape = 'u8[32768]{0}', space=vmem, size = 0x8000, scoped, tag = 'input window, operand 2']
    #allocation11 [shape = 's32[2]{0}', space=sflag, size = 0x8, scoped, tag = 'scoped memory for tpu_custom_call.1']
    #allocation12 [shape = 'u8[8192]{0}', space=vmem, size = 0x2000, scoped, tag = 'output window, operand 0']
    %8 = vsyncpa [#allocation8], 0
    %9 = vsyncpa [#allocation6], 0
    %s10 = scalar_lea.sflag [#allocation6], 1
    %11 = vsyncpa %s10, 0
    %12 = vsyncpa [#allocation11], 0
    %s13 = scalar_lea.sflag [#allocation11], 1
    %14 = vsyncpa %s13, 0
    %15 = vsyncpa [#allocation7], 0
    %s16 = scalar_lea.sflag [#allocation7], 1
    %17 = vsyncpa %s16, 0
    loop: start=0, step=1, limit=4
    $region2: #{tpu_custom_call.1} parent=1 // loop_pre_header
      _
    $region3: #{tpu_custom_call.1} parent=1 // loop_header
      %s19 = sphi 0, %s23
      %p20 = scmp.ge.s32.totalorder %s19, 4
      %s26 = sphi 0, %s38
      %s27 = sphi 0, %s34
      %s28 = sphi 0, %s26
      %s29 = sphi 0, %s27
      %s30 = sphi 0, %s28
      %s31 = sphi 0, %s29
      %s39 = sphi 0, %s39
      %s41 = sphi 0, %s39
      %s42 = sphi 0, %s41
      %s56 = sphi 0, %s42
      %s64 = sphi 0, %s66
      %s67 = sphi 0, %s64
      %s68 = sphi 0, %s67
      %s84 = sphi 0, %s68
      %s92 = sphi 0, %s94
      %s95 = sphi 0, %s92
      %s96 = sphi 0, %s95
      %s112 = sphi 0, %s96
      %s118 = sphi 0, %s120
      %s121 = sphi 0, %s118
      %s122 = sphi 0, %s121
      %s138 = sphi 0, %s122
    $region4: #{tpu_custom_call.1} parent=1 // loop_header_branch
      %22 = sbr.rel (%p20) target = $region8
    $region5: #{tpu_custom_call.1} parent=1 // loop_body
      %s24 = ssub.s32 %s19, 1
      %s25 = ssub.s32 %s19, 2
      %s32 = sadd.s32 1, %s27
      %p33 = scmp.ge.s32.totalorder %s32, 1
      %s34 = scalar_select %p33, 0, %s32
      %s35 = sadd.s32 1, %s26
      %s36 = scalar_select %p33, %s35, %s26
      %p37 = scmp.ge.s32.totalorder %s36, 2
      %s38 = scalar_select %p37, 0, %s36
      %s40 = sadd.s32 %s39, 1
      %p43 = scmp.eq.s32.totalorder %s19, 1
      %p44 = scmp.ne.s32.totalorder %s39, %s41
      %p45 = scmp.eq.s32.totalorder %s19, 0
      %p46 = por %p44, %p45
      %p47 = scmp.ne.s32.totalorder %s39, %s41
      %p48 = scmp.eq.s32.totalorder %s24, 1
      %p49 = por %p47, %p48
      %p50 = scmp.ne.s32.totalorder %s41, %s42
      %p51 = scmp.eq.s32.totalorder %s24, 0
      %p52 = por %p50, %p51
      %p53 = scmp.ne.s32.totalorder %s41, %s42
      %p54 = scmp.eq.s32.totalorder %s25, 1
      %p55 = por %p53, %p54
      %p57 = scmp.ne.s32.totalorder %s42, %s56
      %p58 = scmp.eq.s32.totalorder %s25, 0
      %p59 = por %p57, %p58
      %s60 = sadd.s32 %s26, %s27
      %s61 = sadd.s32 %s38, %s34
      %s62 = ssub.s32 %s60, %s61
      %p63 = scmp.eq.s32.totalorder %s62, 0
      %s65 = sadd.s32 %s64, 1
      %s66 = scalar_select %p63, %s64, %s65
      %p69 = pneg %p63
      %p70 = scmp.eq.s32.totalorder %s19, 1
      %p71 = por %p69, %p70
      %p72 = scmp.ne.s32.totalorder %s64, %s67
      %p73 = scmp.eq.s32.totalorder %s19, 0
      %p74 = por %p72, %p73
      %p75 = scmp.ne.s32.totalorder %s64, %s67
      %p76 = scmp.eq.s32.totalorder %s24, 1
      %p77 = por %p75, %p76
      %p78 = scmp.ne.s32.totalorder %s67, %s68
      %p79 = scmp.eq.s32.totalorder %s24, 0
      %p80 = por %p78, %p79
      %p81 = scmp.ne.s32.totalorder %s67, %s68
      %p82 = scmp.eq.s32.totalorder %s25, 1
      %p83 = por %p81, %p82
      %p85 = scmp.ne.s32.totalorder %s68, %s84
      %p86 = scmp.eq.s32.totalorder %s25, 0
      %p87 = por %p85, %p86
      %s88 = sadd.s32 %s26, %s27
      %s89 = sadd.s32 %s38, %s34
      %s90 = ssub.s32 %s88, %s89
      %p91 = scmp.eq.s32.totalorder %s90, 0
      %s93 = sadd.s32 %s92, 1
      %s94 = scalar_select %p91, %s92, %s93
      %p97 = pneg %p91
      %p98 = scmp.eq.s32.totalorder %s19, 1
      %p99 = por %p97, %p98
      %p100 = scmp.ne.s32.totalorder %s92, %s95
      %p101 = scmp.eq.s32.totalorder %s19, 0
      %p102 = por %p100, %p101
      %p103 = scmp.ne.s32.totalorder %s92, %s95
      %p104 = scmp.eq.s32.totalorder %s24, 1
      %p105 = por %p103, %p104
      %p106 = scmp.ne.s32.totalorder %s95, %s96
      %p107 = scmp.eq.s32.totalorder %s24, 0
      %p108 = por %p106, %p107
      %p109 = scmp.ne.s32.totalorder %s95, %s96
      %p110 = scmp.eq.s32.totalorder %s25, 1
      %p111 = por %p109, %p110
      %p113 = scmp.ne.s32.totalorder %s96, %s112
      %p114 = scmp.eq.s32.totalorder %s25, 0
      %p115 = por %p113, %p114
      %s116 = ssub.s32 %s26, %s38
      %p117 = scmp.eq.s32.totalorder %s116, 0
      %s119 = sadd.s32 %s118, 1
      %s120 = scalar_select %p117, %s118, %s119
      %p123 = pneg %p117
      %p124 = scmp.eq.s32.totalorder %s19, 1
      %p125 = por %p123, %p124
      %p126 = scmp.ne.s32.totalorder %s118, %s121
      %p127 = scmp.eq.s32.totalorder %s19, 0
      %p128 = por %p126, %p127
      %p129 = scmp.ne.s32.totalorder %s118, %s121
      %p130 = scmp.eq.s32.totalorder %s24, 1
      %p131 = por %p129, %p130
      %p132 = scmp.ne.s32.totalorder %s121, %s122
      %p133 = scmp.eq.s32.totalorder %s24, 0
      %p134 = por %p132, %p133
      %p135 = scmp.ne.s32.totalorder %s121, %s122
      %p136 = scmp.eq.s32.totalorder %s25, 1
      %p137 = por %p135, %p136
      %p139 = scmp.ne.s32.totalorder %s122, %s138
      %p140 = scmp.eq.s32.totalorder %s25, 0
      %p141 = por %p139, %p140
      %p142 = scmp.le.s32.totalorder 1, %s19
      %p143 = scmp.lt.s32.totalorder %s19, 3
      %p144 = pnand %p142, %p143
      %p145 = pneg %p144
      // Predicated region
      $region9: #{tpu_custom_call.1} parent=5 // pred_check
        _
      $region10: #{tpu_custom_call.1} parent=5 // pred_check_branch
        %147 = sbr.rel (%p144) target = $region12
      $region11: #{tpu_custom_call.1} parent=5 // pred_region
        %s148 = ssub.s32 %s19, 1
        // Predicated region
        $region13: #{tpu_custom_call.1} parent=11 // pred_check
          %p149 = pneg %p52
        $region14: #{tpu_custom_call.1} parent=11 // pred_check_branch
          %151 = sbr.rel (%p149) target = $region16
        $region15: #{tpu_custom_call.1} parent=11 // pred_region
          %s153 = ssub.s32 16, 16
          %154 = vsyncadd [#allocation8], %s153
          %157 = dma.hbm_to_smem %s0, 16, [#allocation5], [#allocation8]
        $region16: #{tpu_custom_call.1} parent=11 // pred_fallthru
          _
      $region12: #{tpu_custom_call.1} parent=5 // pred_fallthru
        _
      %p158 = scmp.lt.s32.totalorder %s19, 2
      // Predicated region
      $region17: #{tpu_custom_call.1} parent=5 // pred_check
        %p159 = pneg %p158
      $region18: #{tpu_custom_call.1} parent=5 // pred_check_branch
        %161 = sbr.rel (%p159) target = $region20
      $region19: #{tpu_custom_call.1} parent=5 // pred_region
        // Predicated region
        $region21: #{tpu_custom_call.1} parent=19 // pred_check
          %p162 = pneg %p74
        $region22: #{tpu_custom_call.1} parent=19 // pred_check_branch
          %164 = sbr.rel (%p162) target = $region24
        $region23: #{tpu_custom_call.1} parent=19 // pred_region
          %s165 = sand.u32 %s64, 1
          %s166 = scalar_lea.sflag [#allocation6], %s165
          %s167 = sand.u32 %s64, 1
          %s168 = smul.addr %s167, 32
          %s169 = scalar_lea.vmem [#allocation9], %s168
          %s170 = sadd.s32 %s26, %s27
          %s171 = smul.u32 2, %s170
          %s173 = ssub.s32 512, 512
          %174 = vsyncadd %s166, %s173
          %s175 = smul.addr %s171, 2
          %s176 = smul.addr %s175, 128
          %s177 = scalar_lea.hbm %s1, %s176
          %s178 = sshll.u32 %s169, 4
          %s179 = int_to_ptr.vmem [resolvable:$true] %s178
          %184 = dma.hbm_to_vmem [thread:$0]  %s177, 512, %s179, %s166, 256, 256, 16
        $region24: #{tpu_custom_call.1} parent=19 // pred_fallthru
          _
        // Predicated region
        $region25: #{tpu_custom_call.1} parent=19 // pred_check
          %p185 = pneg %p102
        $region26: #{tpu_custom_call.1} parent=19 // pred_check_branch
          %187 = sbr.rel (%p185) target = $region28
        $region27: #{tpu_custom_call.1} parent=19 // pred_region
          %s188 = sand.u32 %s92, 1
          %s189 = scalar_lea.sflag [#allocation11], %s188
          %s190 = sand.u32 %s92, 1
          %s191 = smul.addr %s190, 32
          %s192 = scalar_lea.vmem [#allocation10], %s191
          %s193 = sadd.s32 %s26, %s27
          %s194 = smul.u32 2, %s193
          %s196 = ssub.s32 512, 512
          %197 = vsyncadd %s189, %s196
          %s198 = smul.addr %s194, 2
          %s199 = smul.addr %s198, 128
          %s200 = scalar_lea.hbm %s2, %s199
          %s201 = sshll.u32 %s192, 4
          %s202 = int_to_ptr.vmem [resolvable:$true] %s201
          %207 = dma.hbm_to_vmem [thread:$0]  %s200, 512, %s202, %s189, 256, 256, 16
        $region28: #{tpu_custom_call.1} parent=19 // pred_fallthru
          _
      $region20: #{tpu_custom_call.1} parent=5 // pred_fallthru
        _
      %p208 = scmp.le.s32.totalorder 1, %s19
      %p209 = scmp.lt.s32.totalorder %s19, 3
      %p210 = pnand %p208, %p209
      %p211 = pneg %p210
      // Predicated region
      $region29: #{tpu_custom_call.1} parent=5 // pred_check
        _
      $region30: #{tpu_custom_call.1} parent=5 // pred_check_branch
        %213 = sbr.rel (%p210) target = $region32
      $region31: #{tpu_custom_call.1} parent=5 // pred_region
        %s214 = ssub.s32 %s19, 1
        // Predicated region
        $region33: #{tpu_custom_call.1} parent=31 // pred_check
          %p215 = pneg %p52
        $region34: #{tpu_custom_call.1} parent=31 // pred_check_branch
          %217 = sbr.rel (%p215) target = $region36
        $region35: #{tpu_custom_call.1} parent=31 // pred_region
          %218 = dma.done [#allocation8], 16
        $region36: #{tpu_custom_call.1} parent=31 // pred_fallthru
          _
        %s219 = sand.u32 %s67, 1
        %s220 = scalar_lea.sflag [#allocation6], %s219
        %s221 = sand.u32 %s67, 1
        %s222 = smul.addr %s221, 32
        %s223 = scalar_lea.vmem [#allocation9], %s222
        // Predicated region
        $region37: #{tpu_custom_call.1} parent=31 // pred_check
          %p224 = pneg %p80
        $region38: #{tpu_custom_call.1} parent=31 // pred_check_branch
          %226 = sbr.rel (%p224) target = $region40
        $region39: #{tpu_custom_call.1} parent=31 // pred_region
          %227 = dma.done %s220, 512
        $region40: #{tpu_custom_call.1} parent=31 // pred_fallthru
          _
        %s228 = sand.u32 %s95, 1
        %s229 = scalar_lea.sflag [#allocation11], %s228
        %s230 = sand.u32 %s95, 1
        %s231 = smul.addr %s230, 32
        %s232 = scalar_lea.vmem [#allocation10], %s231
        // Predicated region
        $region41: #{tpu_custom_call.1} parent=31 // pred_check
          %p233 = pneg %p108
        $region42: #{tpu_custom_call.1} parent=31 // pred_check_branch
          %235 = sbr.rel (%p233) target = $region44
        $region43: #{tpu_custom_call.1} parent=31 // pred_region
          %236 = dma.done %s229, 512
        $region44: #{tpu_custom_call.1} parent=31 // pred_fallthru
          _
        %237 = sfence
        %p238 = pneg %p52
        %p239 = pneg %p49
        %s240 = sand.u32 %s67, 1
        %s241 = scalar_lea.sflag [#allocation6], %s240
        %s242 = sand.u32 %s67, 1
        %s243 = smul.addr %s242, 32
        %s244 = scalar_lea.vmem [#allocation9], %s243
        %p245 = pneg %p80
        %p246 = pneg %p77
        %s247 = sand.u32 %s95, 1
        %s248 = scalar_lea.sflag [#allocation11], %s247
        %s249 = sand.u32 %s95, 1
        %s250 = smul.addr %s249, 32
        %s251 = scalar_lea.vmem [#allocation10], %s250
        %p252 = pneg %p108
        %p253 = pneg %p105
        %p254 = pneg %p134
        %p255 = pneg %p131
        %s256 = sand.u32 %s121, 1
        %s257 = scalar_lea.sflag [#allocation7], %s256
        %s258 = sand.u32 %s121, 1
        %s259 = smul.addr %s258, 8
        %s260 = scalar_lea.vmem [#allocation12], %s259
        %s261 = sadd.s32 %s28, %s29
        %s262 = smul.u32 2, %s261
        %s263 = sadd.s32 %s28, %s29
        %s264 = smul.u32 2, %s263
        %p265 = scmp.eq.s32.totalorder %s29, 0
        // Predicated region
        $region45: #{tpu_custom_call.1} parent=31 // pred_check
          %p266 = pneg %p265
        $region46: #{tpu_custom_call.1} parent=31 // pred_check_branch
          %268 = sbr.rel (%p266) target = $region48
        $region47: #{tpu_custom_call.1} parent=31 // pred_region
          %269 = vst [vmem:[#allocation2] sm:$0xff] 0.0
          %270 = vst [vmem:[#allocation2 + $0x8] sm:$0xff] 0.0
          %271 = vst [vmem:[#allocation3] sm:$0xff] 0.0
          %272 = vst [vmem:[#allocation3 + $0x8] sm:$0xff] 0.0
          %273 = vst [vmem:[#allocation4] sm:$0xff] 0.0
          %274 = vst [vmem:[#allocation4 + $0x8] sm:$0xff] 0.0
        $region48: #{tpu_custom_call.1} parent=31 // pred_fallthru
          _
        %s275 = sld [smem:[#allocation5]]
        %s276 = sld [smem:[#allocation5 + $0x1]]
        %v277 = vld [vmem:[%s223] sm:$0xff]
        %v278 = vld [vmem:[%s223 + $0x8] sm:$0xff]
        %v279 = vld [vmem:[%s223 + $0x10] sm:$0xff]
        %v280 = vld [vmem:[%s223 + $0x18] sm:$0xff]
        %v281 = vld [vmem:[%s232] sm:$0xff]
        %v282 = vld [vmem:[%s232 + $0x8] sm:$0xff]
        %v283 = vld [vmem:[%s232 + $0x10] sm:$0xff]
        %v284 = vld [vmem:[%s232 + $0x18] sm:$0xff]
        %s285 = sadd.s32 %s28, %s29
        %s286 = smul.u32 %s285, 16
        %s287 = sadd.s32 %s286, 16
        %p288 = scmp.le.s32.totalorder %s287, 25
        // Predicated region
        $region49: #{tpu_custom_call.1} parent=31 // pred_check
          %p289 = pneg %p288
        $region50: #{tpu_custom_call.1} parent=31 // pred_check_branch
          %291 = sbr.rel (%p289) target = $region52
        $region51: #{tpu_custom_call.1} parent=31 // pred_region
          %v292 = vsub.f32 %v277, %v281
          %v293 = vsub.f32 %v278, %v282
          %v294 = vsub.f32 %v279, %v283
          %v295 = vsub.f32 %v280, %v284
          %v296 = vand.u32 2147483647, %v292
          %v297 = vand.u32 2147483647, %v293
          %v298 = vand.u32 2147483647, %v294
          %v299 = vand.u32 2147483647, %v295
          %v300 = vstv %s275
          %vm301 = vcmp.le.f32.partialorder %v296, %v300
          %vm302 = vcmp.le.f32.partialorder %v297, %v300
          %vm303 = vcmp.le.f32.partialorder %v298, %v300
          %vm304 = vcmp.le.f32.partialorder %v299, %v300
          %v305 = vmul.f32 %v292, 0.5
          %v306 = vmul.f32 %v293, 0.5
          %v307 = vmul.f32 %v294, 0.5
          %v308 = vmul.f32 %v295, 0.5
          %v309 = vmul.f32 %v305, %v292
          %v310 = vmul.f32 %v306, %v293
          %v311 = vmul.f32 %v307, %v294
          %v312 = vmul.f32 %v308, %v295
          %s313 = smul.f32 %s275, 0.5
          %v314 = vstv %s313
          %v315 = vsub.f32 %v296, %v314
          %v316 = vsub.f32 %v297, %v314
          %v317 = vsub.f32 %v298, %v314
          %v318 = vsub.f32 %v299, %v314
          %v319 = vmul.f32 %v300, %v315
          %v320 = vmul.f32 %v300, %v316
          %v321 = vmul.f32 %v300, %v317
          %v322 = vmul.f32 %v300, %v318
          %v323 = vsel %vm301, %v309, %v319
          %v324 = vsel %vm302, %v310, %v320
          %v325 = vsel %vm303, %v311, %v321
          %v326 = vsel %vm304, %v312, %v322
          %v327 = vmax.f32 %v281, 1e-07
          %v328 = vmax.f32 %v282, 1e-07
          %v329 = vmax.f32 %v283, 1e-07
          %v330 = vmax.f32 %v284, 1e-07
          %v331 = vrcp.pop %v327
          %v332 = vrcp.pop %v328
          %v333 = vrcp.pop %v329
          %v334 = vrcp.pop %v330
          %v335 = vmul.f32 %v296, %v331
          %v336 = vmul.f32 %v297, %v332
          %v337 = vmul.f32 %v298, %v333
          %v338 = vmul.f32 %v299, %v334
          %v339 = vstv %s276
          %vm340 = vcmp.lt.f32.partialorder %v335, %v339
          %vm341 = vcmp.lt.f32.partialorder %v336, %v339
          %vm342 = vcmp.lt.f32.partialorder %v337, %v339
          %vm343 = vcmp.lt.f32.partialorder %v338, %v339
          %v344 = vsel %vm340, 1, 0
          %v345 = vsel %vm341, 1, 0
          %v346 = vsel %vm342, 1, 0
          %v347 = vsel %vm343, 1, 0
          %v348 = vcvt.s32.f32 %v344
          %v349 = vcvt.s32.f32 %v345
          %v350 = vcvt.s32.f32 %v346
          %v351 = vcvt.s32.f32 %v347
          %v352 = vld [vmem:[#allocation2] sm:$0xff]
          %v353 = vld [vmem:[#allocation2 + $0x8] sm:$0xff]
          %v354 = vadd.f32 %v323, %v325
          %v355 = vadd.f32 %v324, %v326
          %v356 = vadd.f32 %v352, %v354
          %v357 = vadd.f32 %v353, %v355
          %358 = vst [vmem:[#allocation2] sm:$0xff] %v356
          %359 = vst [vmem:[#allocation2 + $0x8] sm:$0xff] %v357
          %v360 = vld [vmem:[#allocation3] sm:$0xff]
          %v361 = vld [vmem:[#allocation3 + $0x8] sm:$0xff]
          %v362 = vadd.f32 %v335, %v337
          %v363 = vadd.f32 %v336, %v338
          %v364 = vadd.f32 %v360, %v362
          %v365 = vadd.f32 %v361, %v363
          %366 = vst [vmem:[#allocation3] sm:$0xff] %v364
          %367 = vst [vmem:[#allocation3 + $0x8] sm:$0xff] %v365
          %v368 = vld [vmem:[#allocation4] sm:$0xff]
          %v369 = vld [vmem:[#allocation4 + $0x8] sm:$0xff]
          %v370 = vadd.f32 %v348, %v350
          %v371 = vadd.f32 %v349, %v351
          %v372 = vadd.f32 %v368, %v370
          %v373 = vadd.f32 %v369, %v371
          %374 = vst [vmem:[#allocation4] sm:$0xff] %v372
          %375 = vst [vmem:[#allocation4 + $0x8] sm:$0xff] %v373
        $region52: #{tpu_custom_call.1} parent=31 // pred_fallthru
          _
        %p376 = scmp.gt.s32.totalorder %s287, 25
        // Predicated region
        $region53: #{tpu_custom_call.1} parent=31 // pred_check
          %p377 = pneg %p376
        $region54: #{tpu_custom_call.1} parent=31 // pred_check_branch
          %379 = sbr.rel (%p377) target = $region56
        $region55: #{tpu_custom_call.1} parent=31 // pred_region
          %v380 = vlaneseq
          %v381 = vshrl.u32 %v380, 7
          %v382 = vadd.s32 %v381, 8
          %v383 = vstv %s286
          %v384 = vadd.s32 %v383, %v381
          %v385 = vadd.s32 %v383, %v382
          %v386 = vlaneseq
          %v387 = vand.u32 %v386, 127
          %v388 = vadd.s32 %v387, 128
          %vm389 = vcmp.lt.s32.totalorder %v384, 25
          %vm390 = vcmp.lt.s32.totalorder %v385, 25
          %vm391 = vcmp.eq.s32.totalorder %v384, 25
          %vm392 = vcmp.eq.s32.totalorder %v385, 25
          %vm393 = vcmp.lt.s32.totalorder %v387, 0
          %vm394 = vcmp.lt.s32.totalorder %v388, 0
          %vm395 = vmand %vm391, %vm393
          %vm396 = vmand %vm391, %vm394
          %vm397 = vmand %vm392, %vm393
          %vm398 = vmand %vm392, %vm394
          %vm399 = vmor %vm389, %vm395
          %vm400 = vmor %vm389, %vm396
          %vm401 = vmor %vm390, %vm397
          %vm402 = vmor %vm390, %vm398
          %v403 = vsel %vm399, %v277, 1.0
          %v404 = vsel %vm400, %v278, 1.0
          %v405 = vsel %vm401, %v279, 1.0
          %v406 = vsel %vm402, %v280, 1.0
          %v407 = vsel %vm399, %v281, 1.0
          %v408 = vsel %vm400, %v282, 1.0
          %v409 = vsel %vm401, %v283, 1.0
          %v410 = vsel %vm402, %v284, 1.0
          %v411 = vsub.f32 %v403, %v407
          %v412 = vsub.f32 %v404, %v408
          %v413 = vsub.f32 %v405, %v409
          %v414 = vsub.f32 %v406, %v410
          %v415 = vand.u32 2147483647, %v411
          %v416 = vand.u32 2147483647, %v412
          %v417 = vand.u32 2147483647, %v413
          %v418 = vand.u32 2147483647, %v414
          %v419 = vstv %s275
          %vm420 = vcmp.le.f32.partialorder %v415, %v419
          %vm421 = vcmp.le.f32.partialorder %v416, %v419
          %vm422 = vcmp.le.f32.partialorder %v417, %v419
          %vm423 = vcmp.le.f32.partialorder %v418, %v419
          %v424 = vmul.f32 %v411, 0.5
          %v425 = vmul.f32 %v412, 0.5
          %v426 = vmul.f32 %v413, 0.5
          %v427 = vmul.f32 %v414, 0.5
          %v428 = vmul.f32 %v424, %v411
          %v429 = vmul.f32 %v425, %v412
          %v430 = vmul.f32 %v426, %v413
          %v431 = vmul.f32 %v427, %v414
          %s432 = smul.f32 %s275, 0.5
          %v433 = vstv %s432
          %v434 = vsub.f32 %v415, %v433
          %v435 = vsub.f32 %v416, %v433
          %v436 = vsub.f32 %v417, %v433
          %v437 = vsub.f32 %v418, %v433
          %v438 = vmul.f32 %v419, %v434
          %v439 = vmul.f32 %v419, %v435
          %v440 = vmul.f32 %v419, %v436
          %v441 = vmul.f32 %v419, %v437
          %v442 = vsel %vm420, %v428, %v438
          %v443 = vsel %vm421, %v429, %v439
          %v444 = vsel %vm422, %v430, %v440
          %v445 = vsel %vm423, %v431, %v441
          %v446 = vmax.f32 %v407, 1e-07
          %v447 = vmax.f32 %v408, 1e-07
          %v448 = vmax.f32 %v409, 1e-07
          %v449 = vmax.f32 %v410, 1e-07
          %v450 = vrcp.pop %v446
          %v451 = vrcp.pop %v447
          %v452 = vrcp.pop %v448
          %v453 = vrcp.pop %v449
          %v454 = vmul.f32 %v415, %v450
          %v455 = vmul.f32 %v416, %v451
          %v456 = vmul.f32 %v417, %v452
          %v457 = vmul.f32 %v418, %v453
          %v458 = vstv %s276
          %vm459 = vcmp.lt.f32.partialorder %v454, %v458
          %vm460 = vcmp.lt.f32.partialorder %v455, %v458
          %vm461 = vcmp.lt.f32.partialorder %v456, %v458
          %vm462 = vcmp.lt.f32.partialorder %v457, %v458
          %vm463 = vmand %vm459, %vm399
          %vm464 = vmand %vm460, %vm400
          %vm465 = vmand %vm461, %vm401
          %vm466 = vmand %vm462, %vm402
          %v467 = vsel %vm463, 1, 0
          %v468 = vsel %vm464, 1, 0
          %v469 = vsel %vm465, 1, 0
          %v470 = vsel %vm466, 1, 0
          %v471 = vcvt.s32.f32 %v467
          %v472 = vcvt.s32.f32 %v468
          %v473 = vcvt.s32.f32 %v469
          %v474 = vcvt.s32.f32 %v470
          %v475 = vld [vmem:[#allocation2] sm:$0xff]
          %v476 = vld [vmem:[#allocation2 + $0x8] sm:$0xff]
          %v477 = vadd.f32 %v442, %v444
          %v478 = vadd.f32 %v443, %v445
          %v479 = vadd.f32 %v475, %v477
          %v480 = vadd.f32 %v476, %v478
          %481 = vst [vmem:[#allocation2] sm:$0xff] %v479
          %482 = vst [vmem:[#allocation2 + $0x8] sm:$0xff] %v480
          %v483 = vld [vmem:[#allocation3] sm:$0xff]
          %v484 = vld [vmem:[#allocation3 + $0x8] sm:$0xff]
          %v485 = vadd.f32 %v454, %v456
          %v486 = vadd.f32 %v455, %v457
          %v487 = vadd.f32 %v483, %v485
          %v488 = vadd.f32 %v484, %v486
          %489 = vst [vmem:[#allocation3] sm:$0xff] %v487
          %490 = vst [vmem:[#allocation3 + $0x8] sm:$0xff] %v488
          %v491 = vld [vmem:[#allocation4] sm:$0xff]
          %v492 = vld [vmem:[#allocation4 + $0x8] sm:$0xff]
          %v493 = vadd.f32 %v471, %v473
          %v494 = vadd.f32 %v472, %v474
          %v495 = vadd.f32 %v491, %v493
          %v496 = vadd.f32 %v492, %v494
          %497 = vst [vmem:[#allocation4] sm:$0xff] %v495
          %498 = vst [vmem:[#allocation4 + $0x8] sm:$0xff] %v496
        $region56: #{tpu_custom_call.1} parent=31 // pred_fallthru
          _
        // Predicated region
        $region57: #{tpu_custom_call.1} parent=31 // pred_check
          %p499 = pneg %p265
        $region58: #{tpu_custom_call.1} parent=31 // pred_check_branch
          %501 = sbr.rel (%p499) target = $region60
        $region59: #{tpu_custom_call.1} parent=31 // pred_region
          %v502 = vld [vmem:[#allocation2] sm:$0xff]
          %v503 = vld [vmem:[#allocation2 + $0x8] sm:$0xff]
          %v504 = vadd.f32 %v502, %v503
          %505 = vadd.xlane.f32.xlu0 %v504
          %v506 = vpop.xlane.xlu0 %505
          %v507 = vrot.slane %v506, 4
          %v508 = vadd.f32 %v506, %v507
          %v509 = vrot.slane %v508, 2
          %v510 = vadd.f32 %v508, %v509
          %v511 = vrot.slane %v510, 1
          %v512 = vadd.f32 %v510, %v511
          %s513 = vtos %v512
          %v514 = vld [vmem:[#allocation3] sm:$0xff]
          %v515 = vld [vmem:[#allocation3 + $0x8] sm:$0xff]
          %v516 = vadd.f32 %v514, %v515
          %517 = vadd.xlane.f32.xlu0 %v516
          %v518 = vpop.xlane.xlu0 %517
          %v519 = vrot.slane %v518, 4
          %v520 = vadd.f32 %v518, %v519
          %v521 = vrot.slane %v520, 2
          %v522 = vadd.f32 %v520, %v521
          %v523 = vrot.slane %v522, 1
          %v524 = vadd.f32 %v522, %v523
          %s525 = vtos %v524
          %v526 = vld [vmem:[#allocation4] sm:$0xff]
          %v527 = vld [vmem:[#allocation4 + $0x8] sm:$0xff]
          %v528 = vadd.f32 %v526, %v527
          %529 = vadd.xlane.f32.xlu0 %v528
          %v530 = vpop.xlane.xlu0 %529
          %v531 = vrot.slane %v530, 4
          %v532 = vadd.f32 %v530, %v531
          %v533 = vrot.slane %v532, 2
          %v534 = vadd.f32 %v532, %v533
          %v535 = vrot.slane %v534, 1
          %v536 = vadd.f32 %v534, %v535
          %s537 = vtos %v536
          %v538 = vlaneseq
          %v539 = vand.u32 %v538, 127
          %vm540 = vcmp.eq.s32.totalorder %v539, 0
          %vm541 = vcmp.eq.s32.totalorder %v539, 1
          %vm542 = vcmp.eq.s32.totalorder %v539, 2
          %v543 = vstv %s537
          %v544 = vsel %vm542, %v543, 0.0
          %v545 = vstv %s525
          %v546 = vsel %vm541, %v545, %v544
          %v547 = vstv %s513
          %v548 = vsel %vm540, %v547, %v546
          %549 = vst [vmem:[%s260] sm:$0xff] %v548
        $region60: #{tpu_custom_call.1} parent=31 // pred_fallthru
          _
        %s550 = sand.u32 %s121, 1
        %s551 = scalar_lea.sflag [#allocation7], %s550
        %s552 = sand.u32 %s121, 1
        %s553 = smul.addr %s552, 8
        %s554 = scalar_lea.vmem [#allocation12], %s553
        // Predicated region
        $region61: #{tpu_custom_call.1} parent=31 // pred_check
          %p555 = pneg %p131
        $region62: #{tpu_custom_call.1} parent=31 // pred_check_branch
          %557 = sbr.rel (%p555) target = $region64
        $region63: #{tpu_custom_call.1} parent=31 // pred_region
          %s559 = ssub.s32 128, 128
          %560 = vsyncadd %s551, %s559
          %s561 = smul.addr %s28, 128
          %s562 = scalar_lea.hbm %s3, %s561
          %s564 = sshll.u32 %s554, 4
          %s565 = int_to_ptr.vmem [resolvable:$true] %s564
          %567 = dma.vmem_to_hbm [thread:$0]  %s565, 128, %s562, %s551
        $region64: #{tpu_custom_call.1} parent=31 // pred_fallthru
          _
      $region32: #{tpu_custom_call.1} parent=5 // pred_fallthru
        _
      %p568 = scmp.le.s32.totalorder 2, %s19
      // Predicated region
      $region65: #{tpu_custom_call.1} parent=5 // pred_check
        %p569 = pneg %p568
      $region66: #{tpu_custom_call.1} parent=5 // pred_check_branch
        %571 = sbr.rel (%p569) target = $region68
      $region67: #{tpu_custom_call.1} parent=5 // pred_region
        %s572 = ssub.s32 %s19, 2
        // Predicated region
        $region69: #{tpu_custom_call.1} parent=67 // pred_check
          %p573 = pneg %p137
        $region70: #{tpu_custom_call.1} parent=67 // pred_check_branch
          %575 = sbr.rel (%p573) target = $region72
        $region71: #{tpu_custom_call.1} parent=67 // pred_region
          %s576 = sand.u32 %s122, 1
          %s577 = scalar_lea.sflag [#allocation7], %s576
          %s578 = sand.u32 %s122, 1
          %s579 = smul.addr %s578, 8
          %s580 = scalar_lea.vmem [#allocation12], %s579
          %581 = dma.done %s577, 128
        $region72: #{tpu_custom_call.1} parent=67 // pred_fallthru
          _
      $region68: #{tpu_custom_call.1} parent=5 // pred_fallthru
        _
    $region6: #{tpu_custom_call.1} parent=1 // loop_footer
      %s23 = sadd.s32 1, %s19
    $region7: #{tpu_custom_call.1} parent=1 // loop_footer_branch
      %18 = sbr.rel target = $region3
    $region8: #{tpu_custom_call.1} parent=1 // loop_exit
      _
    %582 = vsyncpa [#allocation6], 1
    %s583 = scalar_lea.sflag [#allocation6], 1
    %584 = vsyncpa %s583, 1
    %585 = vsyncpa [#allocation11], 1
    %s586 = scalar_lea.sflag [#allocation11], 1
    %587 = vsyncpa %s586, 1
    %588 = vsyncpa [#allocation7], 1
    %s589 = scalar_lea.sflag [#allocation7], 1
    %590 = vsyncpa %s589, 1
    %591 = vsyncpa [#allocation8], 1
    %s592 = scalar_lea.sflag [#allocation8], 1
    %593 = vsyncpa %s592, 1

</llo_original>
